<compile_context>
chip_gen: v7x
topology: tpu7x:2x2x1
jax: 0.10.0
libtpu: 0.0.40
codegen_flags: <defaults>
</compile_context>

<pallas_src>
import jax
import jax.numpy as jnp
from jax.experimental import pallas as pl
from jax.experimental.pallas import tpu as pltpu

LN_EPS = 1e-5  # PyTorch nn.LayerNorm default


def _round_up(a, b):
    return ((a + b - 1) // b) * b


def _make_radial_kernel(num_layers):
    """Build a fused kernel for `num_layers` Linear layers.

    Kernel ref order: (x_ref, [W, b, (gamma, beta)] * layers..., o_ref)
    (gamma/beta only for non-final layers).
    """

    def kernel(*refs):
        x_ref = refs[0]
        o_ref = refs[-1]
        params = refs[1:-1]

        h = x_ref[...].astype(jnp.float32)
        idx = 0
        for i in range(num_layers):
            is_last = i == num_layers - 1
            w = params[idx][...]
            b = params[idx + 1][...].astype(jnp.float32)
            idx += 2
            # bf16 weights -> native bf16 MXU operands (f32 accumulation);
            # f32 weights stay on the multi-pass f32 MXU path.
            lhs = h.astype(w.dtype) if w.dtype == jnp.bfloat16 else h
            h = jnp.dot(lhs, w, preferred_element_type=jnp.float32) + b
            if not is_last:
                gamma = params[idx][...].astype(jnp.float32)
                beta = params[idx + 1][...].astype(jnp.float32)
                idx += 2
                # LayerNorm over last dim: two-pass variance (PyTorch semantics),
                # gamma folded into the rsqrt scale.
                mu = jnp.mean(h, axis=-1, keepdims=True)
                d = h - mu
                var = jnp.mean(d * d, axis=-1, keepdims=True)
                scale = gamma * jax.lax.rsqrt(var + LN_EPS)
                h = d * scale + beta
                # SiLU
                h = h * jax.nn.sigmoid(h)
        o_ref[...] = h.astype(o_ref.dtype)

    return kernel


def _choose_tile(n, tile_n):
    """Pick the rows-per-grid-step tile.

    Small N: one tile rounded to the 8-sublane boundary.  Large N: big tiles
    (multiple of 256 -> full MXU tiles), but capped so the grid has >= 2 steps
    (v7x megacore sharding of the "parallel" row axis).
    """
    n8 = _round_up(max(n, 8), 8)
    if n8 <= 512:
        return n8  # single small tile; megacore split not worth it at this size
    half = _round_up(pl.cdiv(n, 2), 256)
    return max(256, min(tile_n, half))


def prepare_params(params, channels_list, weights_dtype=None):
    """One-time parameter preparation (call once, reuse across radial_function calls).

    Optionally casts the Linear weights to `weights_dtype` (e.g. jnp.bfloat16 for the
    single-pass bf16 MXU path).  Biases / LN gamma / LN beta are kept in f32.
    """
    num_layers = len(channels_list) - 1
    params = list(params)
    out = []
    idx = 0
    for i in range(num_layers):
        w, b = params[idx], params[idx + 1]
        idx += 2
        if weights_dtype is not None:
            w = w.astype(weights_dtype)
        out += [w, b.astype(jnp.float32)]
        if i != num_layers - 1:
            g, be = params[idx], params[idx + 1]
            idx += 2
            out += [g.astype(jnp.float32), be.astype(jnp.float32)]
    return out


def radial_function(x, params, channels_list, *, tile_n=2048):
    """Apply the RadialFunction MLP to x of shape (N, channels_list[0]).

    params: flat list [W1, b1, g1, beta1, W2, b2, g2, beta2, ..., W_last, b_last]
      where W_i has shape (C_{i-1}, C_i), and b/g/beta have shape (1, C_i)
      (see `prepare_params`).

    tile_n: max rows per grid step (multiple of 256).
    """
    n, c_in = x.shape
    assert c_in == channels_list[0]
    num_layers = len(channels_list) - 1
    c_out = channels_list[-1]

    tile = _choose_tile(n, tile_n)
    grid = pl.cdiv(n, tile)

    kernel = _make_radial_kernel(num_layers)

    # x tile: last dim = full array dim, row dim multiple of 8 -> (8,128) rule OK.
    in_specs = [pl.BlockSpec((tile, c_in), lambda i: (i, 0))]
    for p in params:
        # Full-array block with a constant index map: block index never changes,
        # so the params stay VMEM-resident with no per-step re-DMA.
        in_specs.append(pl.BlockSpec(p.shape, lambda i, nd=p.ndim: (0,) * nd))
    # Output keeps the true channel count (full-dim last block); ragged last row
    # block is masked on writeback by Pallas.
    out_spec = pl.BlockSpec((tile, c_out), lambda i: (i, 0))

    return pl.pallas_call(
        kernel,
        out_shape=jax.ShapeDtypeStruct((n, c_out), x.dtype),
        grid_spec=pltpu.PrefetchScalarGridSpec(
            num_scalar_prefetch=0,
            grid=(grid,),
            in_specs=in_specs,
            out_specs=out_spec,
        ),
        compiler_params=pltpu.CompilerParams(
            dimension_semantics=("parallel",)),
    )(x, *params)


def init_params(key, channels_list, dtype=jnp.float32):
    """Deterministic parameter init (synthetic; matches the module's shapes)."""
    params = []
    num_layers = len(channels_list) - 1
    for i in range(num_layers):
        c_in, c_out = channels_list[i], channels_list[i + 1]
        key, kw, kb = jax.random.split(key, 3)
        bound = 1.0 / jnp.sqrt(c_in)
        # Stored as (in, out) — transpose of PyTorch's nn.Linear weight (out, in).
        w = jax.random.uniform(kw, (c_in, c_out), dtype, -bound, bound)
        b = jax.random.uniform(kb, (1, c_out), dtype, -bound, bound)
        params += [w, b]
        if i != num_layers - 1:
            # LayerNorm: gamma=1, beta=0 (PyTorch default init)
            params += [jnp.ones((1, c_out), dtype), jnp.zeros((1, c_out), dtype)]
    return params


def radial_function_ref(x, params, channels_list):
    """Pure-JAX reference (two-pass LayerNorm, PyTorch semantics).

    Mirrors the kernel's dtype policy: bf16 weights -> bf16 operands with f32
    accumulation; f32 weights -> HIGHEST-precision f32 matmul (to match the
    multi-pass f32 MXU path used inside the kernel).
    """
    num_layers = len(channels_list) - 1
    h = x.astype(jnp.float32)
    idx = 0
    for i in range(num_layers):
        is_last = i == num_layers - 1
        w, b = params[idx], params[idx + 1]
        idx += 2
        if w.dtype == jnp.bfloat16:
            lhs, prec = h.astype(jnp.bfloat16), None
        else:
            lhs, prec = h, jax.lax.Precision.HIGHEST
        h = jnp.dot(lhs, w, preferred_element_type=jnp.float32,
                    precision=prec) + b.astype(jnp.float32)
        if not is_last:
            g, be = params[idx], params[idx + 1]
            idx += 2
            mu = jnp.mean(h, axis=-1, keepdims=True)
            var = jnp.mean(jnp.square(h - mu), axis=-1, keepdims=True)
            h = (h - mu) * jax.lax.rsqrt(var + LN_EPS) * g.astype(jnp.float32) \
                + be.astype(jnp.float32)
            h = h * jax.nn.sigmoid(h)
    return h.astype(x.dtype)


if __name__ == "__main__":
    # RadialFunction(channels_list=[32, 64, 64, 48]).
    channels_list = [32, 64, 64, 48]

    key = jax.random.PRNGKey(0)
    key, kp = jax.random.split(key)
    raw_params = init_params(kp, channels_list)

    # One-time param prep (f32 weights).
    params_f32 = prepare_params(raw_params, channels_list)

    # Case 1: tiny input — single small tile, masked 48-wide output store.
    key, kx1 = jax.random.split(key)
    x1 = jax.random.normal(kx1, (16, channels_list[0]), jnp.float32)
    out1 = jax.block_until_ready(radial_function(x1, params_f32, channels_list))
    ref1 = radial_function_ref(x1, params_f32, channels_list)
    assert out1.shape == (16, channels_list[-1]) and out1.dtype == x1.dtype
    assert jnp.allclose(out1, ref1, atol=1e-4, rtol=1e-3), "mismatch vs reference (case 1)"

    # Case 2: larger N not a multiple of the tile — exercises the ragged last block
    # (N=1300 -> tile 768, grid 2, last block has 532 valid rows, masked writeback).
    key, kx2 = jax.random.split(key)
    x2 = jax.random.normal(kx2, (1300, channels_list[0]), jnp.float32)
    out2 = jax.block_until_ready(radial_function(x2, params_f32, channels_list))
    ref2 = radial_function_ref(x2, params_f32, channels_list)
    assert out2.shape == (1300, channels_list[-1]) and out2.dtype == x2.dtype
    assert jnp.allclose(out2, ref2, atol=1e-4, rtol=1e-3), "mismatch vs reference (case 2)"

    # Case 3: bf16 weights (single-pass bf16 MXU path, f32 LN/SiLU math).
    params_bf16 = prepare_params(raw_params, channels_list,
                                 weights_dtype=jnp.bfloat16)
    out3 = jax.block_until_ready(radial_function(x2, params_bf16, channels_list))
    ref3 = radial_function_ref(x2, params_bf16, channels_list)
    assert out3.shape == (1300, channels_list[-1]) and out3.dtype == x2.dtype
    assert jnp.allclose(out3, ref3, atol=1e-2, rtol=1e-2), "mismatch vs reference (case 3)"

    print("KERNEL_OK")
</pallas_src>

<mosaic_0001>
module attributes {stable_mosaic.version = 11 : i64} {
  func.func @kernel(%arg0: i32, %arg1: memref<16x32xf32, #tpu.memory_space<vmem>>, %arg2: memref<32x64xf32, #tpu.memory_space<vmem>>, %arg3: memref<1x64xf32, #tpu.memory_space<vmem>>, %arg4: memref<1x64xf32, #tpu.memory_space<vmem>>, %arg5: memref<1x64xf32, #tpu.memory_space<vmem>>, %arg6: memref<64x64xf32, #tpu.memory_space<vmem>>, %arg7: memref<1x64xf32, #tpu.memory_space<vmem>>, %arg8: memref<1x64xf32, #tpu.memory_space<vmem>>, %arg9: memref<1x64xf32, #tpu.memory_space<vmem>>, %arg10: memref<64x48xf32, #tpu.memory_space<vmem>>, %arg11: memref<1x48xf32, #tpu.memory_space<vmem>>, %arg12: memref<16x48xf32, #tpu.memory_space<vmem>>) attributes {dimension_semantics = [#tpu.dimension_semantics<parallel>], iteration_bounds = array<i64: 1>, scalar_prefetch = 0 : i64, scratch_operands = 0 : i64, tpu.core_type = #tpu.core_type<tc>, window_params = [{transform_indices = @transform_0, window_bounds = array<i64: 16, 32>}, {pipeline_mode = #tpu.pipeline_mode<synchronous>, transform_indices = @transform_1, window_bounds = array<i64: 32, 64>}, {pipeline_mode = #tpu.pipeline_mode<synchronous>, transform_indices = @transform_2, window_bounds = array<i64: 1, 64>}, {pipeline_mode = #tpu.pipeline_mode<synchronous>, transform_indices = @transform_3, window_bounds = array<i64: 1, 64>}, {pipeline_mode = #tpu.pipeline_mode<synchronous>, transform_indices = @transform_4, window_bounds = array<i64: 1, 64>}, {pipeline_mode = #tpu.pipeline_mode<synchronous>, transform_indices = @transform_5, window_bounds = array<i64: 64, 64>}, {pipeline_mode = #tpu.pipeline_mode<synchronous>, transform_indices = @transform_6, window_bounds = array<i64: 1, 64>}, {pipeline_mode = #tpu.pipeline_mode<synchronous>, transform_indices = @transform_7, window_bounds = array<i64: 1, 64>}, {pipeline_mode = #tpu.pipeline_mode<synchronous>, transform_indices = @transform_8, window_bounds = array<i64: 1, 64>}, {pipeline_mode = #tpu.pipeline_mode<synchronous>, transform_indices = @transform_9, window_bounds = array<i64: 64, 48>}, {pipeline_mode = #tpu.pipeline_mode<synchronous>, transform_indices = @transform_10, window_bounds = array<i64: 1, 48>}, {transform_indices = @transform_11, window_bounds = array<i64: 16, 48>}]} {
    %c0 = arith.constant 0 : index
    %c0_0 = arith.constant 0 : index
    %0 = vector.load %arg1[%c0, %c0_0] : memref<16x32xf32, #tpu.memory_space<vmem>>, vector<16x32xf32>
    %c0_1 = arith.constant 0 : index
    %c0_2 = arith.constant 0 : index
    %1 = vector.load %arg2[%c0_1, %c0_2] : memref<32x64xf32, #tpu.memory_space<vmem>>, vector<32x64xf32>
    %c0_3 = arith.constant 0 : index
    %c0_4 = arith.constant 0 : index
    %2 = vector.load %arg3[%c0_3, %c0_4] : memref<1x64xf32, #tpu.memory_space<vmem>>, vector<1x64xf32>
    %cst = arith.constant dense<0.000000e+00> : vector<16x64xf32>
    %3 = tpu.matmul %0, %1, %cst {dimension_numbers = #tpu.dot_dimension_numbers<[1], [0], [0], [1], [0, 0, 1, 1], [], []>} : vector<16x32xf32>, vector<32x64xf32>, vector<16x64xf32> -> vector<16x64xf32>
    %4 = vector.broadcast %2 : vector<1x64xf32> to vector<16x64xf32>
    %5 = arith.addf %3, %4 : vector<16x64xf32>
    %c0_5 = arith.constant 0 : index
    %c0_6 = arith.constant 0 : index
    %6 = vector.load %arg4[%c0_5, %c0_6] : memref<1x64xf32, #tpu.memory_space<vmem>>, vector<1x64xf32>
    %c0_7 = arith.constant 0 : index
    %c0_8 = arith.constant 0 : index
    %7 = vector.load %arg5[%c0_7, %c0_8] : memref<1x64xf32, #tpu.memory_space<vmem>>, vector<1x64xf32>
    %cst_9 = arith.constant dense<0.000000e+00> : vector<16xf32>
    %8 = vector.multi_reduction <add>, %5, %cst_9 [1] : vector<16x64xf32> to vector<16xf32>
    %9 = vector.shape_cast %8 : vector<16xf32> to vector<16x1xf32>
    %cst_10 = arith.constant 6.400000e+01 : f32
    %10 = vector.broadcast %cst_10 : f32 to vector<16x1xf32>
    %11 = arith.divf %9, %10 : vector<16x1xf32>
    %12 = vector.broadcast %11 : vector<16x1xf32> to vector<16x64xf32>
    %13 = arith.subf %5, %12 : vector<16x64xf32>
    %14 = arith.mulf %13, %13 : vector<16x64xf32>
    %cst_11 = arith.constant dense<0.000000e+00> : vector<16xf32>
    %15 = vector.multi_reduction <add>, %14, %cst_11 [1] : vector<16x64xf32> to vector<16xf32>
    %16 = vector.shape_cast %15 : vector<16xf32> to vector<16x1xf32>
    %cst_12 = arith.constant 6.400000e+01 : f32
    %17 = vector.broadcast %cst_12 : f32 to vector<16x1xf32>
    %18 = arith.divf %16, %17 : vector<16x1xf32>
    %cst_13 = arith.constant 9.99999974E-6 : f32
    %19 = vector.broadcast %cst_13 : f32 to vector<16x1xf32>
    %20 = arith.addf %18, %19 : vector<16x1xf32>
    %21 = math.rsqrt %20 : vector<16x1xf32>
    %22 = vector.broadcast %6 : vector<1x64xf32> to vector<16x64xf32>
    %23 = vector.broadcast %21 : vector<16x1xf32> to vector<16x64xf32>
    %24 = arith.mulf %22, %23 : vector<16x64xf32>
    %25 = arith.mulf %13, %24 : vector<16x64xf32>
    %26 = vector.broadcast %7 : vector<1x64xf32> to vector<16x64xf32>
    %27 = arith.addf %25, %26 : vector<16x64xf32>
    %28 = arith.negf %27 : vector<16x64xf32>
    %29 = math.exp %28 : vector<16x64xf32>
    %cst_14 = arith.constant 1.000000e+00 : f32
    %30 = vector.broadcast %cst_14 : f32 to vector<16x64xf32>
    %31 = arith.addf %30, %29 : vector<16x64xf32>
    %32 = arith.divf %30, %31 : vector<16x64xf32>
    %33 = arith.mulf %27, %32 : vector<16x64xf32>
    %c0_15 = arith.constant 0 : index
    %c0_16 = arith.constant 0 : index
    %34 = vector.load %arg6[%c0_15, %c0_16] : memref<64x64xf32, #tpu.memory_space<vmem>>, vector<64x64xf32>
    %c0_17 = arith.constant 0 : index
    %c0_18 = arith.constant 0 : index
    %35 = vector.load %arg7[%c0_17, %c0_18] : memref<1x64xf32, #tpu.memory_space<vmem>>, vector<1x64xf32>
    %cst_19 = arith.constant dense<0.000000e+00> : vector<16x64xf32>
    %36 = tpu.matmul %33, %34, %cst_19 {dimension_numbers = #tpu.dot_dimension_numbers<[1], [0], [0], [1], [0, 0, 1, 1], [], []>} : vector<16x64xf32>, vector<64x64xf32>, vector<16x64xf32> -> vector<16x64xf32>
    %37 = vector.broadcast %35 : vector<1x64xf32> to vector<16x64xf32>
    %38 = arith.addf %36, %37 : vector<16x64xf32>
    %c0_20 = arith.constant 0 : index
    %c0_21 = arith.constant 0 : index
    %39 = vector.load %arg8[%c0_20, %c0_21] : memref<1x64xf32, #tpu.memory_space<vmem>>, vector<1x64xf32>
    %c0_22 = arith.constant 0 : index
    %c0_23 = arith.constant 0 : index
    %40 = vector.load %arg9[%c0_22, %c0_23] : memref<1x64xf32, #tpu.memory_space<vmem>>, vector<1x64xf32>
    %cst_24 = arith.constant dense<0.000000e+00> : vector<16xf32>
    %41 = vector.multi_reduction <add>, %38, %cst_24 [1] : vector<16x64xf32> to vector<16xf32>
    %42 = vector.shape_cast %41 : vector<16xf32> to vector<16x1xf32>
    %cst_25 = arith.constant 6.400000e+01 : f32
    %43 = vector.broadcast %cst_25 : f32 to vector<16x1xf32>
    %44 = arith.divf %42, %43 : vector<16x1xf32>
    %45 = vector.broadcast %44 : vector<16x1xf32> to vector<16x64xf32>
    %46 = arith.subf %38, %45 : vector<16x64xf32>
    %47 = arith.mulf %46, %46 : vector<16x64xf32>
    %cst_26 = arith.constant dense<0.000000e+00> : vector<16xf32>
    %48 = vector.multi_reduction <add>, %47, %cst_26 [1] : vector<16x64xf32> to vector<16xf32>
    %49 = vector.shape_cast %48 : vector<16xf32> to vector<16x1xf32>
    %cst_27 = arith.constant 6.400000e+01 : f32
    %50 = vector.broadcast %cst_27 : f32 to vector<16x1xf32>
    %51 = arith.divf %49, %50 : vector<16x1xf32>
    %cst_28 = arith.constant 9.99999974E-6 : f32
    %52 = vector.broadcast %cst_28 : f32 to vector<16x1xf32>
    %53 = arith.addf %51, %52 : vector<16x1xf32>
    %54 = math.rsqrt %53 : vector<16x1xf32>
    %55 = vector.broadcast %39 : vector<1x64xf32> to vector<16x64xf32>
    %56 = vector.broadcast %54 : vector<16x1xf32> to vector<16x64xf32>
    %57 = arith.mulf %55, %56 : vector<16x64xf32>
    %58 = arith.mulf %46, %57 : vector<16x64xf32>
    %59 = vector.broadcast %40 : vector<1x64xf32> to vector<16x64xf32>
    %60 = arith.addf %58, %59 : vector<16x64xf32>
    %61 = arith.negf %60 : vector<16x64xf32>
    %62 = math.exp %61 : vector<16x64xf32>
    %cst_29 = arith.constant 1.000000e+00 : f32
    %63 = vector.broadcast %cst_29 : f32 to vector<16x64xf32>
    %64 = arith.addf %63, %62 : vector<16x64xf32>
    %65 = arith.divf %63, %64 : vector<16x64xf32>
    %66 = arith.mulf %60, %65 : vector<16x64xf32>
    %c0_30 = arith.constant 0 : index
    %c0_31 = arith.constant 0 : index
    %67 = vector.load %arg10[%c0_30, %c0_31] : memref<64x48xf32, #tpu.memory_space<vmem>>, vector<64x48xf32>
    %c0_32 = arith.constant 0 : index
    %c0_33 = arith.constant 0 : index
    %68 = vector.load %arg11[%c0_32, %c0_33] : memref<1x48xf32, #tpu.memory_space<vmem>>, vector<1x48xf32>
    %cst_34 = arith.constant dense<0.000000e+00> : vector<16x48xf32>
    %69 = tpu.matmul %66, %67, %cst_34 {dimension_numbers = #tpu.dot_dimension_numbers<[1], [0], [0], [1], [0, 0, 1, 1], [], []>} : vector<16x64xf32>, vector<64x48xf32>, vector<16x48xf32> -> vector<16x48xf32>
    %70 = vector.broadcast %68 : vector<1x48xf32> to vector<16x48xf32>
    %71 = arith.addf %69, %70 : vector<16x48xf32>
    %c0_35 = arith.constant 0 : index
    %c0_36 = arith.constant 0 : index
    %72 = vector.load %arg12[%c0_35, %c0_36] : memref<16x48xf32, #tpu.memory_space<vmem>>, vector<16x48xf32>
    tpu.vector_store %arg12[%c0_35, %c0_36], %71 {strides = array<i32>} : memref<16x48xf32, #tpu.memory_space<vmem>>, vector<16x48xf32>,
    return
  }
  func.func @transform_0(%arg0: i32) -> (i32, i32) {
    %c0_i32 = arith.constant 0 : i32
    %c0_i32_0 = arith.constant 0 : i32
    return %arg0, %c0_i32 : i32, i32
  }
  func.func @transform_1(%arg0: i32) -> (i32, i32) {
    %c0_i32 = arith.constant 0 : i32
    %c0_i32_0 = arith.constant 0 : i32
    %c0_i32_1 = arith.constant 0 : i32
    return %c0_i32, %c0_i32_0 : i32, i32
  }
  func.func @transform_2(%arg0: i32) -> (i32, i32) {
    %c0_i32 = arith.constant 0 : i32
    %c0_i32_0 = arith.constant 0 : i32
    %c0_i32_1 = arith.constant 0 : i32
    return %c0_i32, %c0_i32_0 : i32, i32
  }
  func.func @transform_3(%arg0: i32) -> (i32, i32) {
    %c0_i32 = arith.constant 0 : i32
    %c0_i32_0 = arith.constant 0 : i32
    %c0_i32_1 = arith.constant 0 : i32
    return %c0_i32, %c0_i32_0 : i32, i32
  }
  func.func @transform_4(%arg0: i32) -> (i32, i32) {
    %c0_i32 = arith.constant 0 : i32
    %c0_i32_0 = arith.constant 0 : i32
    %c0_i32_1 = arith.constant 0 : i32
    return %c0_i32, %c0_i32_0 : i32, i32
  }
  func.func @transform_5(%arg0: i32) -> (i32, i32) {
    %c0_i32 = arith.constant 0 : i32
    %c0_i32_0 = arith.constant 0 : i32
    %c0_i32_1 = arith.constant 0 : i32
    return %c0_i32, %c0_i32_0 : i32, i32
  }
  func.func @transform_6(%arg0: i32) -> (i32, i32) {
    %c0_i32 = arith.constant 0 : i32
    %c0_i32_0 = arith.constant 0 : i32
    %c0_i32_1 = arith.constant 0 : i32
    return %c0_i32, %c0_i32_0 : i32, i32
  }
  func.func @transform_7(%arg0: i32) -> (i32, i32) {
    %c0_i32 = arith.constant 0 : i32
    %c0_i32_0 = arith.constant 0 : i32
    %c0_i32_1 = arith.constant 0 : i32
    return %c0_i32, %c0_i32_0 : i32, i32
  }
  func.func @transform_8(%arg0: i32) -> (i32, i32) {
    %c0_i32 = arith.constant 0 : i32
    %c0_i32_0 = arith.constant 0 : i32
    %c0_i32_1 = arith.constant 0 : i32
    return %c0_i32, %c0_i32_0 : i32, i32
  }
  func.func @transform_9(%arg0: i32) -> (i32, i32) {
    %c0_i32 = arith.constant 0 : i32
    %c0_i32_0 = arith.constant 0 : i32
    %c0_i32_1 = arith.constant 0 : i32
    return %c0_i32, %c0_i32_0 : i32, i32
  }
  func.func @transform_10(%arg0: i32) -> (i32, i32) {
    %c0_i32 = arith.constant 0 : i32
    %c0_i32_0 = arith.constant 0 : i32
    %c0_i32_1 = arith.constant 0 : i32
    return %c0_i32, %c0_i32_0 : i32, i32
  }
  func.func @transform_11(%arg0: i32) -> (i32, i32) {
    %c0_i32 = arith.constant 0 : i32
    %c0_i32_0 = arith.constant 0 : i32
    return %arg0, %c0_i32 : i32, i32
  }
}

</mosaic_0001>

<llo_original>
// kernel: tpu_custom_call.1
$region0: #{tpu_custom_call.1}
  #allocation0 [shape = 'u32[]', space=smem, size = 0x4, offset = 0x4, fixed_abs, tag = 'smem constant byte address 0x4 - core index']
  #allocation1 [shape = 'u32[144,128]{1,0:T(1,128)}', space=vmem, size = 0x12000, scoped, tag = 'internal scratch']
  %s0 = inlined_call_operand.vmem [shape: f32[16,32], index: 0, kind: input, shape index: {}]
  %s1 = inlined_call_operand.vmem [shape: f32[32,64], index: 1, kind: input, shape index: {}]
  %s2 = inlined_call_operand.vmem [shape: f32[1,64], index: 2, kind: input, shape index: {}]
  %s3 = inlined_call_operand.vmem [shape: f32[1,64], index: 3, kind: input, shape index: {}]
  %s4 = inlined_call_operand.vmem [shape: f32[1,64], index: 4, kind: input, shape index: {}]
  %s5 = inlined_call_operand.vmem [shape: f32[64,64], index: 5, kind: input, shape index: {}]
  %s6 = inlined_call_operand.vmem [shape: f32[1,64], index: 6, kind: input, shape index: {}]
  %s7 = inlined_call_operand.vmem [shape: f32[1,64], index: 7, kind: input, shape index: {}]
  %s8 = inlined_call_operand.vmem [shape: f32[1,64], index: 8, kind: input, shape index: {}]
  %s9 = inlined_call_operand.vmem [shape: f32[64,48], index: 9, kind: input, shape index: {}]
  %s10 = inlined_call_operand.vmem [shape: f32[1,48], index: 10, kind: input, shape index: {}]
  %s11 = inlined_call_operand.hbm [shape: f32[16,48], index: 11, kind: output, shape index: {}]
  %s12 = sld [smem:[#allocation0]]
  $region54: #{tpu_custom_call.1} parent=0
    _
  %s14 = ssub.s32 1, %s12
  %s15 = scalar_select 0, %s14, %s12
  $region1: #{tpu_custom_call.1} parent=0
    #allocation2 [shape = 'u8[8192]{0}', space=vmem, size = 0x2000, scoped, tag = 'output window, operand 0, single buffered']
    #allocation3 [shape = 's32[1]{0}', space=sflag, size = 0x4, scoped, tag = 'scoped memory for tpu_custom_call.1']
    %16 = vsyncpa [#allocation3], 0
    // Predicated region
    $region2: #{tpu_custom_call.1} parent=1 // pred_check
      _
    $region3: #{tpu_custom_call.1} parent=1 // pred_check_branch
      %18 = sbr.rel (0) target = $region5
    $region4: #{tpu_custom_call.1} parent=1 // pred_region
      _
    $region5: #{tpu_custom_call.1} parent=1 // pred_fallthru
      _
    // Predicated region
    $region6: #{tpu_custom_call.1} parent=1 // pred_check
      _
    $region7: #{tpu_custom_call.1} parent=1 // pred_check_branch
      %20 = sbr.rel (0) target = $region9
    $region8: #{tpu_custom_call.1} parent=1 // pred_region
      _
    $region9: #{tpu_custom_call.1} parent=1 // pred_fallthru
      _
    // Predicated region
    $region10: #{tpu_custom_call.1} parent=1 // pred_check
      _
    $region11: #{tpu_custom_call.1} parent=1 // pred_check_branch
      %22 = sbr.rel (0) target = $region13
    $region12: #{tpu_custom_call.1} parent=1 // pred_region
      _
    $region13: #{tpu_custom_call.1} parent=1 // pred_fallthru
      _
    // Predicated region
    $region14: #{tpu_custom_call.1} parent=1 // pred_check
      _
    $region15: #{tpu_custom_call.1} parent=1 // pred_check_branch
      %24 = sbr.rel (0) target = $region17
    $region16: #{tpu_custom_call.1} parent=1 // pred_region
      _
    $region17: #{tpu_custom_call.1} parent=1 // pred_fallthru
      _
    // Predicated region
    $region18: #{tpu_custom_call.1} parent=1 // pred_check
      _
    $region19: #{tpu_custom_call.1} parent=1 // pred_check_branch
      %26 = sbr.rel (0) target = $region21
    $region20: #{tpu_custom_call.1} parent=1 // pred_region
      _
    $region21: #{tpu_custom_call.1} parent=1 // pred_fallthru
      _
    // Predicated region
    $region22: #{tpu_custom_call.1} parent=1 // pred_check
      _
    $region23: #{tpu_custom_call.1} parent=1 // pred_check_branch
      %28 = sbr.rel (0) target = $region25
    $region24: #{tpu_custom_call.1} parent=1 // pred_region
      _
    $region25: #{tpu_custom_call.1} parent=1 // pred_fallthru
      _
    // Predicated region
    $region26: #{tpu_custom_call.1} parent=1 // pred_check
      _
    $region27: #{tpu_custom_call.1} parent=1 // pred_check_branch
      %30 = sbr.rel (0) target = $region29
    $region28: #{tpu_custom_call.1} parent=1 // pred_region
      _
    $region29: #{tpu_custom_call.1} parent=1 // pred_fallthru
      _
    // Predicated region
    $region30: #{tpu_custom_call.1} parent=1 // pred_check
      _
    $region31: #{tpu_custom_call.1} parent=1 // pred_check_branch
      %32 = sbr.rel (0) target = $region33
    $region32: #{tpu_custom_call.1} parent=1 // pred_region
      _
    $region33: #{tpu_custom_call.1} parent=1 // pred_fallthru
      _
    // Predicated region
    $region34: #{tpu_custom_call.1} parent=1 // pred_check
      _
    $region35: #{tpu_custom_call.1} parent=1 // pred_check_branch
      %34 = sbr.rel (0) target = $region37
    $region36: #{tpu_custom_call.1} parent=1 // pred_region
      _
    $region37: #{tpu_custom_call.1} parent=1 // pred_fallthru
      _
    // Predicated region
    $region38: #{tpu_custom_call.1} parent=1 // pred_check
      _
    $region39: #{tpu_custom_call.1} parent=1 // pred_check_branch
      %36 = sbr.rel (0) target = $region41
    $region40: #{tpu_custom_call.1} parent=1 // pred_region
      _
    $region41: #{tpu_custom_call.1} parent=1 // pred_fallthru
      _
    // Predicated region
    $region42: #{tpu_custom_call.1} parent=1 // pred_check
      _
    $region43: #{tpu_custom_call.1} parent=1 // pred_check_branch
      %38 = sbr.rel (0) target = $region45
    $region44: #{tpu_custom_call.1} parent=1 // pred_region
      _
    $region45: #{tpu_custom_call.1} parent=1 // pred_fallthru
      _
    %v39 = vld [vmem:[%s0] sm:$0xff]
    %v40 = vld [vmem:[%s0 + $0x8] sm:$0xff]
    %v41 = vld [vmem:[%s1] sm:$0xff]
    %v42 = vld [vmem:[%s1 + $0x8] sm:$0xff]
    %v43 = vld [vmem:[%s1 + $0x10] sm:$0xff]
    %v44 = vld [vmem:[%s1 + $0x18] sm:$0xff]
    %v45 = vld [vmem:[%s2] sm:$0x1]
    %v47 = vlaneseq
    %v48 = vshrl.u32 %v47, 7
    %v49 = vsub.s32 0, %v48
    %v50 = vrot.slane %v45, %v49
    %vm52 = vcmask 261120
    %v54 = vsel %vm52, %v39, 0
    %v57 = vsel %vm52, %v40, 0
    %59 = vmatprep.subr.mxu0 0.0
    %60 = vmatpush1.msra.mxu0 %v41
    %61 = vmatprep.subr.mxu0 0.0
    %62 = vmatpush1.msra.mxu0 %v42
    %63 = vmatprep.subr.mxu0 0.0
    %64 = vmatpush1.msra.mxu0 %v43
    %65 = vmatprep.subr.mxu0 0.0
    %66 = vmatpush1.msra.mxu0 %v44
    %67 = vmatprep.subr.mxu0 0.0
    %68 = vmatpush1.msra.mxu0 0.0
    %69 = vmatprep.subr.mxu0 0.0
    %70 = vmatpush1.msra.mxu0 0.0
    %71 = vmatprep.subr.mxu0 0.0
    %72 = vmatpush1.msra.mxu0 0.0
    %73 = vmatprep.subr.mxu0 0.0
    %74 = vmatpush1.msra.mxu0 0.0
    %75 = vmatprep.subr.mxu0 0.0
    %76 = vmatpush1.msra.mxu0 0.0
    %77 = vmatprep.subr.mxu0 0.0
    %78 = vmatpush1.msra.mxu0 0.0
    %79 = vmatprep.subr.mxu0 0.0
    %80 = vmatpush1.msra.mxu0 0.0
    %81 = vmatprep.subr.mxu0 0.0
    %82 = vmatpush1.msra.mxu0 0.0
    %83 = vmatprep.subr.mxu0 0.0
    %84 = vmatpush1.msra.mxu0 0.0
    %85 = vmatprep.subr.mxu0 0.0
    %86 = vmatpush1.msra.mxu0 0.0
    %87 = vmatprep.subr.mxu0 0.0
    %88 = vmatpush1.msra.mxu0 0.0
    %89 = vmatprep.subr.mxu0 0.0
    %90 = vmatpush1.msra.mxu0 0.0
    %91 = vmatprep.subr.mxu0 0.0
    %92 = vmatpush1.msra.mxu0 0.0
    %93 = vmatprep.subr.mxu0 0.0
    %94 = vmatpush1.msra.mxu0 0.0
    %95 = vmatprep.subr.mxu0 0.0
    %96 = vmatpush1.msra.mxu0 0.0
    %97 = vmatprep.subr.mxu0 0.0
    %98 = vmatpush1.msra.mxu0 0.0
    %99 = vmatprep.subr.mxu0 0.0
    %100 = vmatpush1.msra.mxu0 0.0
    %101 = vmatprep.subr.mxu0 0.0
    %102 = vmatpush1.msra.mxu0 0.0
    %103 = vmatprep.subr.mxu0 0.0
    %104 = vmatpush1.msra.mxu0 0.0
    %105 = vmatprep.subr.mxu0 0.0
    %106 = vmatpush1.msra.mxu0 0.0
    %107 = vmatprep.subr.mxu0 0.0
    %108 = vmatpush1.msra.mxu0 0.0
    %109 = vmatprep.subr.mxu0 0.0
    %110 = vmatpush1.msra.mxu0 0.0
    %111 = vmatprep.subr.mxu0 0.0
    %112 = vmatpush1.msra.mxu0 0.0
    %113 = vmatprep.subr.mxu0 0.0
    %114 = vmatpush1.msra.mxu0 0.0
    %115 = vmatprep.subr.mxu0 0.0
    %116 = vmatpush1.msra.mxu0 0.0
    %117 = vmatprep.subr.mxu0 0.0
    %118 = vmatpush1.msra.mxu0 0.0
    %119 = vmatprep.subr.mxu0 0.0
    %120 = vmatpush1.msra.mxu0 0.0
    %121 = vmatprep.subr.mxu0 0.0
    %122 = vmatpush1.msra.mxu0 0.0
    %123 = vmatprep.mubr.f32.mxu0 0.0
    %124 = vmatmul.mubr.f32.gmra.mrb[0].mxu0 %v54
    %v125 = vpop.f32.mrb[0].mxu0
    %v126 = vadd.f32 %v50, %v125
    %v127 = vpop.f32.mrb[0].mxu0
    %128 = vmatprep.mubr.f32.mxu0 0.0
    %129 = vmatmul.mubr.f32.gmra.mrb[0].mxu0 %v57
    %v130 = vpop.f32.mrb[0].mxu0
    %v131 = vadd.f32 %v50, %v130
    %v132 = vpop.f32.mrb[0].mxu0
    %133 = vdwg.mxu0
    %v134 = vld [vmem:[%s3] sm:$0x1]
    %v135 = vld [vmem:[%s4] sm:$0x1]
    %vm136 = vcmask 523264
    %v137 = vsel %vm136, %v126, 0.0
    %138 = vadd.xlane.f32.xlu0 %v137
    %v139 = vpop.xlane.xlu0 %138
    %v140 = vsel %vm136, %v131, 0.0
    %141 = vadd.xlane.f32.xlu0 %v140
    %v142 = vpop.xlane.xlu0 %141
    %v143 = vrcp.pop 64.0
    %v144 = vmul.f32 %v139, %v143
    %v145 = vmul.f32 %v142, %v143
    %v146 = vsub.f32 %v126, %v144
    %v147 = vsub.f32 %v131, %v145
    %v148 = vmul.f32 %v146, %v146
    %v149 = vmul.f32 %v147, %v147
    %v150 = vsel %vm136, %v148, 0.0
    %151 = vadd.xlane.f32.xlu0 %v150
    %v152 = vpop.xlane.xlu0 %151
    %v153 = vsel %vm136, %v149, 0.0
    %154 = vadd.xlane.f32.xlu0 %v153
    %v155 = vpop.xlane.xlu0 %154
    %v156 = vmul.f32 %v152, %v143
    %v157 = vmul.f32 %v155, %v143
    %v158 = vadd.f32 %v156, 1e-05
    %v159 = vadd.f32 %v157, 1e-05
    %v160 = vrsqrt.pop %v158
    %v161 = vrsqrt.pop %v159
    %v163 = vlaneseq
    %v164 = vshrl.u32 %v163, 7
    %v165 = vsub.s32 0, %v164
    %v166 = vrot.slane %v134, %v165
    %v168 = vmul.f32 %v166, %v160
    %v169 = vmul.f32 %v166, %v161
    %v170 = vmul.f32 %v146, %v168
    %v171 = vmul.f32 %v147, %v169
    %v173 = vlaneseq
    %v174 = vshrl.u32 %v173, 7
    %v175 = vsub.s32 0, %v174
    %v176 = vrot.slane %v135, %v175
    %v178 = vadd.f32 %v170, %v176
    %v179 = vadd.f32 %v171, %v176
    %v180 = vxor.u32 %v178, 2147483648
    %v181 = vxor.u32 %v179, 2147483648
    %v182 = vmul.f32 %v180, 1.442695
    %v183 = vpow.pop %v182
    %v184 = vmul.f32 %v181, 1.442695
    %v185 = vpow.pop %v184
    %v186 = vadd.f32 %v183, 1.0
    %v187 = vadd.f32 %v185, 1.0
    %v188 = vrcp.pop %v186
    %v189 = vmul.f32 1.0, %v188
    %v190 = vrcp.pop %v187
    %v191 = vmul.f32 1.0, %v190
    %v192 = vmul.f32 %v178, %v189
    %v193 = vmul.f32 %v179, %v191
    %v194 = vld [vmem:[%s5] sm:$0xff]
    %v195 = vld [vmem:[%s5 + $0x8] sm:$0xff]
    %v196 = vld [vmem:[%s5 + $0x10] sm:$0xff]
    %v197 = vld [vmem:[%s5 + $0x18] sm:$0xff]
    %v198 = vld [vmem:[%s5 + $0x20] sm:$0xff]
    %v199 = vld [vmem:[%s5 + $0x28] sm:$0xff]
    %v200 = vld [vmem:[%s5 + $0x30] sm:$0xff]
    %v201 = vld [vmem:[%s5 + $0x38] sm:$0xff]
    %v202 = vld [vmem:[%s6] sm:$0x1]
    %v204 = vlaneseq
    %v205 = vshrl.u32 %v204, 7
    %v206 = vsub.s32 0, %v205
    %v207 = vrot.slane %v202, %v206
    %v210 = vsel %vm136, %v192, 0
    %v213 = vsel %vm136, %v193, 0
    %215 = vmatprep.subr.mxu0 0.0
    %216 = vmatpush1.msra.mxu0 %v194
    %217 = vmatprep.subr.mxu0 0.0
    %218 = vmatpush1.msra.mxu0 %v195
    %219 = vmatprep.subr.mxu0 0.0
    %220 = vmatpush1.msra.mxu0 %v196
    %221 = vmatprep.subr.mxu0 0.0
    %222 = vmatpush1.msra.mxu0 %v197
    %223 = vmatprep.subr.mxu0 0.0
    %224 = vmatpush1.msra.mxu0 %v198
    %225 = vmatprep.subr.mxu0 0.0
    %226 = vmatpush1.msra.mxu0 %v199
    %227 = vmatprep.subr.mxu0 0.0
    %228 = vmatpush1.msra.mxu0 %v200
    %229 = vmatprep.subr.mxu0 0.0
    %230 = vmatpush1.msra.mxu0 %v201
    %231 = vmatprep.subr.mxu0 0.0
    %232 = vmatpush1.msra.mxu0 0.0
    %233 = vmatprep.subr.mxu0 0.0
    %234 = vmatpush1.msra.mxu0 0.0
    %235 = vmatprep.subr.mxu0 0.0
    %236 = vmatpush1.msra.mxu0 0.0
    %237 = vmatprep.subr.mxu0 0.0
    %238 = vmatpush1.msra.mxu0 0.0
    %239 = vmatprep.subr.mxu0 0.0
    %240 = vmatpush1.msra.mxu0 0.0
    %241 = vmatprep.subr.mxu0 0.0
    %242 = vmatpush1.msra.mxu0 0.0
    %243 = vmatprep.subr.mxu0 0.0
    %244 = vmatpush1.msra.mxu0 0.0
    %245 = vmatprep.subr.mxu0 0.0
    %246 = vmatpush1.msra.mxu0 0.0
    %247 = vmatprep.subr.mxu0 0.0
    %248 = vmatpush1.msra.mxu0 0.0
    %249 = vmatprep.subr.mxu0 0.0
    %250 = vmatpush1.msra.mxu0 0.0
    %251 = vmatprep.subr.mxu0 0.0
    %252 = vmatpush1.msra.mxu0 0.0
    %253 = vmatprep.subr.mxu0 0.0
    %254 = vmatpush1.msra.mxu0 0.0
    %255 = vmatprep.subr.mxu0 0.0
    %256 = vmatpush1.msra.mxu0 0.0
    %257 = vmatprep.subr.mxu0 0.0
    %258 = vmatpush1.msra.mxu0 0.0
    %259 = vmatprep.subr.mxu0 0.0
    %260 = vmatpush1.msra.mxu0 0.0
    %261 = vmatprep.subr.mxu0 0.0
    %262 = vmatpush1.msra.mxu0 0.0
    %263 = vmatprep.subr.mxu0 0.0
    %264 = vmatpush1.msra.mxu0 0.0
    %265 = vmatprep.subr.mxu0 0.0
    %266 = vmatpush1.msra.mxu0 0.0
    %267 = vmatprep.subr.mxu0 0.0
    %268 = vmatpush1.msra.mxu0 0.0
    %269 = vmatprep.subr.mxu0 0.0
    %270 = vmatpush1.msra.mxu0 0.0
    %271 = vmatprep.subr.mxu0 0.0
    %272 = vmatpush1.msra.mxu0 0.0
    %273 = vmatprep.subr.mxu0 0.0
    %274 = vmatpush1.msra.mxu0 0.0
    %275 = vmatprep.subr.mxu0 0.0
    %276 = vmatpush1.msra.mxu0 0.0
    %277 = vmatprep.subr.mxu0 0.0
    %278 = vmatpush1.msra.mxu0 0.0
    %279 = vmatprep.mubr.f32.mxu0 0.0
    %280 = vmatmul.mubr.f32.gmra.mrb[0].mxu0 %v210
    %v281 = vpop.f32.mrb[0].mxu0
    %v282 = vadd.f32 %v207, %v281
    %v283 = vpop.f32.mrb[0].mxu0
    %284 = vmatprep.mubr.f32.mxu0 0.0
    %285 = vmatmul.mubr.f32.gmra.mrb[0].mxu0 %v213
    %v286 = vpop.f32.mrb[0].mxu0
    %v287 = vadd.f32 %v207, %v286
    %v288 = vpop.f32.mrb[0].mxu0
    %289 = vdwg.mxu0
    %v290 = vld [vmem:[%s7] sm:$0x1]
    %v291 = vld [vmem:[%s8] sm:$0x1]
    %v292 = vsel %vm136, %v282, 0.0
    %293 = vadd.xlane.f32.xlu0 %v292
    %v294 = vpop.xlane.xlu0 %293
    %v295 = vsel %vm136, %v287, 0.0
    %296 = vadd.xlane.f32.xlu0 %v295
    %v297 = vpop.xlane.xlu0 %296
    %v298 = vmul.f32 %v294, %v143
    %v299 = vmul.f32 %v297, %v143
    %v300 = vsub.f32 %v282, %v298
    %v301 = vsub.f32 %v287, %v299
    %v302 = vmul.f32 %v300, %v300
    %v303 = vmul.f32 %v301, %v301
    %v304 = vsel %vm136, %v302, 0.0
    %305 = vadd.xlane.f32.xlu0 %v304
    %v306 = vpop.xlane.xlu0 %305
    %v307 = vsel %vm136, %v303, 0.0
    %308 = vadd.xlane.f32.xlu0 %v307
    %v309 = vpop.xlane.xlu0 %308
    %v310 = vmul.f32 %v306, %v143
    %v311 = vmul.f32 %v309, %v143
    %v312 = vadd.f32 %v310, 1e-05
    %v313 = vadd.f32 %v311, 1e-05
    %v314 = vrsqrt.pop %v312
    %v315 = vrsqrt.pop %v313
    %v317 = vlaneseq
    %v318 = vshrl.u32 %v317, 7
    %v319 = vsub.s32 0, %v318
    %v320 = vrot.slane %v290, %v319
    %v322 = vmul.f32 %v320, %v314
    %v323 = vmul.f32 %v320, %v315
    %v324 = vmul.f32 %v300, %v322
    %v325 = vmul.f32 %v301, %v323
    %v327 = vlaneseq
    %v328 = vshrl.u32 %v327, 7
    %v329 = vsub.s32 0, %v328
    %v330 = vrot.slane %v291, %v329
    %v332 = vadd.f32 %v324, %v330
    %v333 = vadd.f32 %v325, %v330
    %v334 = vxor.u32 %v332, 2147483648
    %v335 = vxor.u32 %v333, 2147483648
    %v336 = vmul.f32 %v334, 1.442695
    %v337 = vpow.pop %v336
    %v338 = vmul.f32 %v335, 1.442695
    %v339 = vpow.pop %v338
    %v340 = vadd.f32 %v337, 1.0
    %v341 = vadd.f32 %v339, 1.0
    %v342 = vrcp.pop %v340
    %v343 = vmul.f32 1.0, %v342
    %v344 = vrcp.pop %v341
    %v345 = vmul.f32 1.0, %v344
    %v346 = vmul.f32 %v332, %v343
    %v347 = vmul.f32 %v333, %v345
    %v348 = vld [vmem:[%s9] sm:$0xff]
    %v349 = vld [vmem:[%s9 + $0x8] sm:$0xff]
    %v350 = vld [vmem:[%s9 + $0x10] sm:$0xff]
    %v351 = vld [vmem:[%s9 + $0x18] sm:$0xff]
    %v352 = vld [vmem:[%s9 + $0x20] sm:$0xff]
    %v353 = vld [vmem:[%s9 + $0x28] sm:$0xff]
    %v354 = vld [vmem:[%s9 + $0x30] sm:$0xff]
    %v355 = vld [vmem:[%s9 + $0x38] sm:$0xff]
    %v356 = vld [vmem:[%s10] sm:$0x1]
    %v358 = vlaneseq
    %v359 = vshrl.u32 %v358, 7
    %v360 = vsub.s32 0, %v359
    %v361 = vrot.slane %v356, %v360
    %v364 = vsel %vm136, %v346, 0
    %v367 = vsel %vm136, %v347, 0
    %369 = vmatprep.subr.mxu0 0.0
    %370 = vmatpush1.msra.mxu0 %v348
    %371 = vmatprep.subr.mxu0 0.0
    %372 = vmatpush1.msra.mxu0 %v349
    %373 = vmatprep.subr.mxu0 0.0
    %374 = vmatpush1.msra.mxu0 %v350
    %375 = vmatprep.subr.mxu0 0.0
    %376 = vmatpush1.msra.mxu0 %v351
    %377 = vmatprep.subr.mxu0 0.0
    %378 = vmatpush1.msra.mxu0 %v352
    %379 = vmatprep.subr.mxu0 0.0
    %380 = vmatpush1.msra.mxu0 %v353
    %381 = vmatprep.subr.mxu0 0.0
    %382 = vmatpush1.msra.mxu0 %v354
    %383 = vmatprep.subr.mxu0 0.0
    %384 = vmatpush1.msra.mxu0 %v355
    %385 = vmatprep.subr.mxu0 0.0
    %386 = vmatpush1.msra.mxu0 0.0
    %387 = vmatprep.subr.mxu0 0.0
    %388 = vmatpush1.msra.mxu0 0.0
    %389 = vmatprep.subr.mxu0 0.0
    %390 = vmatpush1.msra.mxu0 0.0
    %391 = vmatprep.subr.mxu0 0.0
    %392 = vmatpush1.msra.mxu0 0.0
    %393 = vmatprep.subr.mxu0 0.0
    %394 = vmatpush1.msra.mxu0 0.0
    %395 = vmatprep.subr.mxu0 0.0
    %396 = vmatpush1.msra.mxu0 0.0
    %397 = vmatprep.subr.mxu0 0.0
    %398 = vmatpush1.msra.mxu0 0.0
    %399 = vmatprep.subr.mxu0 0.0
    %400 = vmatpush1.msra.mxu0 0.0
    %401 = vmatprep.subr.mxu0 0.0
    %402 = vmatpush1.msra.mxu0 0.0
    %403 = vmatprep.subr.mxu0 0.0
    %404 = vmatpush1.msra.mxu0 0.0
    %405 = vmatprep.subr.mxu0 0.0
    %406 = vmatpush1.msra.mxu0 0.0
    %407 = vmatprep.subr.mxu0 0.0
    %408 = vmatpush1.msra.mxu0 0.0
    %409 = vmatprep.subr.mxu0 0.0
    %410 = vmatpush1.msra.mxu0 0.0
    %411 = vmatprep.subr.mxu0 0.0
    %412 = vmatpush1.msra.mxu0 0.0
    %413 = vmatprep.subr.mxu0 0.0
    %414 = vmatpush1.msra.mxu0 0.0
    %415 = vmatprep.subr.mxu0 0.0
    %416 = vmatpush1.msra.mxu0 0.0
    %417 = vmatprep.subr.mxu0 0.0
    %418 = vmatpush1.msra.mxu0 0.0
    %419 = vmatprep.subr.mxu0 0.0
    %420 = vmatpush1.msra.mxu0 0.0
    %421 = vmatprep.subr.mxu0 0.0
    %422 = vmatpush1.msra.mxu0 0.0
    %423 = vmatprep.subr.mxu0 0.0
    %424 = vmatpush1.msra.mxu0 0.0
    %425 = vmatprep.subr.mxu0 0.0
    %426 = vmatpush1.msra.mxu0 0.0
    %427 = vmatprep.subr.mxu0 0.0
    %428 = vmatpush1.msra.mxu0 0.0
    %429 = vmatprep.subr.mxu0 0.0
    %430 = vmatpush1.msra.mxu0 0.0
    %431 = vmatprep.subr.mxu0 0.0
    %432 = vmatpush1.msra.mxu0 0.0
    %433 = vmatprep.mubr.f32.mxu0 0.0
    %434 = vmatmul.mubr.f32.gmra.mrb[0].mxu0 %v364
    %v435 = vpop.f32.mrb[0].mxu0
    %v436 = vadd.f32 %v361, %v435
    %v437 = vpop.f32.mrb[0].mxu0
    %438 = vmatprep.mubr.f32.mxu0 0.0
    %439 = vmatmul.mubr.f32.gmra.mrb[0].mxu0 %v367
    %v440 = vpop.f32.mrb[0].mxu0
    %v441 = vadd.f32 %v361, %v440
    %v442 = vpop.f32.mrb[0].mxu0
    %443 = vdwg.mxu0
    %vm444 = vcmask 392192
    %445 = vst.msk [vmem:[#allocation2] sm:$0xff] %vm444, %v436
    %446 = vst.msk [vmem:[#allocation2 + $0x8] sm:$0xff] %vm444, %v441
    // Predicated region
    $region46: #{tpu_custom_call.1} parent=1 // pred_check
      _
    $region47: #{tpu_custom_call.1} parent=1 // pred_check_branch
      %448 = sbr.rel (0) target = $region49
    $region48: #{tpu_custom_call.1} parent=1 // pred_region
      %s450 = ssub.s32 256, 256
      %451 = vsyncadd [#allocation3], %s450
      %s452 = sshll.u32 [#allocation2], 4
      %s453 = int_to_ptr.vmem [resolvable:$true] %s452
      %458 = dma.vmem_to_hbm [thread:$0]  %s453, 256, %s11, [#allocation3], 128, 128, 8
    $region49: #{tpu_custom_call.1} parent=1 // pred_fallthru
      _
    // Predicated region
    $region50: #{tpu_custom_call.1} parent=1 // pred_check
      _
    $region51: #{tpu_custom_call.1} parent=1 // pred_check_branch
      %460 = sbr.rel (0) target = $region53
    $region52: #{tpu_custom_call.1} parent=1 // pred_region
      %461 = dma.done [#allocation3], 256
    $region53: #{tpu_custom_call.1} parent=1 // pred_fallthru
      _
    %462 = vsyncpa [#allocation3], 1

</llo_original>
